<compile_context>
chip_gen: v6e
topology: v6e:2x2x1
jax: 0.10.0
libtpu: 0.0.40
codegen_flags: <defaults>
</compile_context>

<pallas_src>
import jax
import jax.numpy as jnp
from jax.experimental import pallas as pl
from jax.experimental.pallas import tpu as pltpu


def _round_up(n, m):
    return ((n + m - 1) // m) * m


def encoder_kernel(x_ref, w1_ref, b1_ref, w2_ref, b2_ref, w3_ref, b3_ref, o_ref):
    """Fused 3x (Linear + ReLU) for one batch tile."""
    cdt = w1_ref.dtype  # matmul operand dtype (f32 or bf16)

    # x arrives in f32; casting here is VPU filler hidden under the MXU and
    # avoids a wrapper-side padded/cast HBM round trip.
    x = x_ref[...].astype(cdt)

    # Layer 1: Linear + ReLU (f32 accumulation, f32 bias/ReLU)
    h = jnp.dot(x, w1_ref[...], preferred_element_type=jnp.float32)
    h = jnp.maximum(h + b1_ref[...], 0.0)

    # Layer 2: Linear + ReLU
    h = jnp.dot(h.astype(cdt), w2_ref[...], preferred_element_type=jnp.float32)
    h = jnp.maximum(h + b2_ref[...], 0.0)

    # Layer 3: Linear + ReLU (output lanes padded to 128 -> unmasked vst)
    h = jnp.dot(h.astype(cdt), w3_ref[...], preferred_element_type=jnp.float32)
    o_ref[...] = jnp.maximum(h + b3_ref[...], 0.0).astype(o_ref.dtype)


def prepare_params(params, compute_dtype=jnp.bfloat16):
    """One-time weight preparation (hoisted out of the per-call path).

    PyTorch nn.Linear weights (out, in) are transposed to (in, out); every
    *output* feature dim is zero-padded to a multiple of 128 (lane-dense MXU N
    and lane-dense stores). w1 keeps its true K (= in_dim) so the activation
    input never needs feature padding. Weights are cast to `compute_dtype`
    (bf16 recommended on all generations: native MXU dtype, half the weight
    VMEM/DMA); biases stay f32 for the VPU epilogue.
    """
    w1, b1 = params["w1"], params["b1"]
    w2, b2 = params["w2"], params["b2"]
    w3, b3 = params["w3"], params["b3"]
    in_dim, hidden, enc_out = w1.shape[1], w1.shape[0], w3.shape[0]
    hid_p = _round_up(hidden, 128)
    out_p = _round_up(enc_out, 128)

    def pad2(a, rows, cols):
        return jnp.pad(a, ((0, rows - a.shape[0]), (0, cols - a.shape[1])))

    return {
        "w1": pad2(w1.T, in_dim, hid_p).astype(compute_dtype),
        "b1": pad2(b1.reshape(1, -1), 1, hid_p).astype(jnp.float32),
        "w2": pad2(w2.T, hid_p, hid_p).astype(compute_dtype),
        "b2": pad2(b2.reshape(1, -1), 1, hid_p).astype(jnp.float32),
        "w3": pad2(w3.T, hid_p, out_p).astype(compute_dtype),
        "b3": pad2(b3.reshape(1, -1), 1, out_p).astype(jnp.float32),
        "dims": (in_dim, hidden, enc_out),
        "compute_dtype": compute_dtype,
    }


def encoder_forward(x, prep, *, block_b=None):
    """x: (B, in_dim) float32. prep: output of prepare_params()."""
    B, in_dim = x.shape
    in_dim0, hidden, enc_out = prep["dims"]
    assert in_dim == in_dim0, "input feature dim mismatch"
    cdt = prep["compute_dtype"]

    w1, b1 = prep["w1"], prep["b1"]
    w2, b2 = prep["w2"], prep["b2"]
    w3, b3 = prep["w3"], prep["b3"]
    hid_p = w1.shape[1]
    out_p = w3.shape[1]

    # --- batch tiling --------------------------------------------------------
    if block_b is None:
        # Small/medium batches: single grid step. Grid-invariant weights are
        # DMA'd once regardless, and on single-TC chips (v5e/v6e) extra steps
        # are pure ~600-cycle overhead with nothing to overlap.
        # Large batches: 256-row tiles (16-aligned for bf16 sublane packing,
        # fills the MXU M dim, and gives each v7x TensorCore >=256 rows under
        # the "parallel" batch axis).
        block_b = B if B < 512 else 256
    block_b = min(block_b, B)
    if block_b < B:
        block_b = _round_up(block_b, 16)
    if block_b >= B:
        block_b = B  # full-extent block: no alignment / padding needed

    B_pad = _round_up(B, block_b)
    if B_pad != B:
        # Batch-only, same-dtype pad (no feature pad, no dtype-cast round trip).
        x = jnp.pad(x, ((0, B_pad - B), (0, 0)))
    grid = (B_pad // block_b,)

    # --- VMEM budget (weights single-buffered, x/out tiles double-buffered) --
    cbytes = jnp.dtype(cdt).itemsize
    weight_bytes = (in_dim * hid_p + hid_p * hid_p + hid_p * out_p) * cbytes
    bias_bytes = (2 * hid_p + out_p) * 4
    io_bytes = 2 * block_b * in_dim * 4 + 2 * block_b * out_p * 4
    interm_bytes = 3 * block_b * hid_p * 4 + 2 * block_b * hid_p * cbytes
    est = weight_bytes + bias_bytes + io_bytes + interm_bytes
    try:
        vmem_cap = int(pltpu.get_tpu_info().vmem_capacity_bytes)
    except Exception:
        vmem_cap = 64 << 20  # conservative (v7x per-TC) fallback
    cap = int(vmem_cap * 4 // 5)  # ~51 MiB on v7x, ~102 MiB on v5e/v6e
    vmem_limit = int(min(max(est + est // 4 + (4 << 20), 16 << 20), cap))
    # TODO(synk): for hidden >~ 3-4k on v7x, add a K/N grid axis ("arbitrary",
    # last) with an f32 accumulator so w2 streams instead of residing in VMEM.

    flops = 2 * B_pad * (in_dim * hidden + hidden * hidden + hidden * enc_out)
    bytes_accessed = (
        B_pad * in_dim * 4
        + weight_bytes
        + bias_bytes
        + B_pad * out_p * 4
    )
    cost = pl.CostEstimate(flops=flops, transcendentals=0,
                           bytes_accessed=bytes_accessed)

    inv = lambda i: (0, 0)     # grid-invariant blocks (weights / biases)
    single = pl.Buffered(1)    # no redundant second pipeline buffer for them

    out = pl.pallas_call(
        encoder_kernel,
        out_shape=jax.ShapeDtypeStruct((B_pad, out_p), jnp.float32),
        grid_spec=pltpu.PrefetchScalarGridSpec(
            num_scalar_prefetch=0,
            grid=grid,
            in_specs=[
                pl.BlockSpec((block_b, in_dim), lambda i: (i, 0)),        # x tile (f32)
                pl.BlockSpec((in_dim, hid_p), inv, pipeline_mode=single),  # w1
                pl.BlockSpec((1, hid_p), inv, pipeline_mode=single),       # b1
                pl.BlockSpec((hid_p, hid_p), inv, pipeline_mode=single),   # w2
                pl.BlockSpec((1, hid_p), inv, pipeline_mode=single),       # b2
                pl.BlockSpec((hid_p, out_p), inv, pipeline_mode=single),   # w3
                pl.BlockSpec((1, out_p), inv, pipeline_mode=single),       # b3
            ],
            out_specs=pl.BlockSpec((block_b, out_p), lambda i: (i, 0)),
        ),
        compiler_params=pltpu.CompilerParams(
            dimension_semantics=("parallel",),
            vmem_limit_bytes=vmem_limit,
        ),
        cost_estimate=cost,
    )(x, w1, b1, w2, b2, w3, b3)

    # Slice away batch padding and the lane padding of the narrow output.
    return out[:B, :enc_out]


def init_params(key, in_dim, hidden_dim, enc_out_dim):
    """Deterministic init mimicking nn.Linear shapes (PyTorch convention)."""
    ks = jax.random.split(key, 6)

    def lin(kw, kb, fan_in, fan_out):
        bound = 1.0 / jnp.sqrt(fan_in)
        w = jax.random.uniform(kw, (fan_out, fan_in), jnp.float32, -bound, bound)
        b = jax.random.uniform(kb, (fan_out,), jnp.float32, -bound, bound)
        return w, b

    w1, b1 = lin(ks[0], ks[1], in_dim, hidden_dim)
    w2, b2 = lin(ks[2], ks[3], hidden_dim, hidden_dim)
    w3, b3 = lin(ks[4], ks[5], hidden_dim, enc_out_dim)
    return {"w1": w1, "b1": b1, "w2": w2, "b2": b2, "w3": w3, "b3": b3}


def encoder_reference(x, p):
    h = jnp.maximum(x @ p["w1"].T + p["b1"], 0.0)
    h = jnp.maximum(h @ p["w2"].T + p["b2"], 0.0)
    return jnp.maximum(h @ p["w3"].T + p["b3"], 0.0)


if __name__ == "__main__":
    in_dim, hidden_dim, enc_out_dim = 32, 64, 16
    batch = 64

    key = jax.random.PRNGKey(0)
    kx, kp = jax.random.split(key)
    x = jax.random.normal(kx, (batch, in_dim), dtype=jnp.float32)
    params = init_params(kp, in_dim, hidden_dim, enc_out_dim)
    ref = encoder_reference(x, params)

    # f32 operands: numerically faithful to the PyTorch module (single grid step).
    prep_f32 = prepare_params(params, compute_dtype=jnp.float32)
    out_f32 = jax.block_until_ready(encoder_forward(x, prep_f32))
    assert out_f32.shape == (batch, enc_out_dim)
    assert jnp.allclose(out_f32, ref, atol=1e-5, rtol=1e-5)

    # Explicit multi-step grid: exercises the pipelined / batch-tiled path.
    out_tiled = jax.block_until_ready(encoder_forward(x, prep_f32, block_b=32))
    assert jnp.allclose(out_tiled, ref, atol=1e-5, rtol=1e-5)

    # bf16 operands (recommended on all generations): f32 accumulation, small drift.
    prep_bf16 = prepare_params(params, compute_dtype=jnp.bfloat16)
    out_bf16 = jax.block_until_ready(encoder_forward(x, prep_bf16))
    assert out_bf16.shape == (batch, enc_out_dim)
    assert jnp.allclose(out_bf16, ref, atol=5e-2, rtol=5e-2)

    print("KERNEL_OK")
</pallas_src>

<mosaic_0001>
module attributes {stable_mosaic.version = 11 : i64} {
  func.func @encoder_kernel(%arg0: i32, %arg1: memref<64x32xf32, #tpu.memory_space<vmem>>, %arg2: memref<32x128xf32, #tpu.memory_space<vmem>>, %arg3: memref<1x128xf32, #tpu.memory_space<vmem>>, %arg4: memref<128x128xf32, #tpu.memory_space<vmem>>, %arg5: memref<1x128xf32, #tpu.memory_space<vmem>>, %arg6: memref<128x128xf32, #tpu.memory_space<vmem>>, %arg7: memref<1x128xf32, #tpu.memory_space<vmem>>, %arg8: memref<64x128xf32, #tpu.memory_space<vmem>>) attributes {dimension_semantics = [#tpu.dimension_semantics<parallel>], iteration_bounds = array<i64: 1>, scalar_prefetch = 0 : i64, scratch_operands = 0 : i64, tpu.core_type = #tpu.core_type<tc>, window_params = [{transform_indices = @transform_0, window_bounds = array<i64: 64, 32>}, {pipeline_mode = #tpu.pipeline_mode<synchronous>, transform_indices = @transform_1, window_bounds = array<i64: 32, 128>}, {pipeline_mode = #tpu.pipeline_mode<synchronous>, transform_indices = @transform_2, window_bounds = array<i64: 1, 128>}, {pipeline_mode = #tpu.pipeline_mode<synchronous>, transform_indices = @transform_3, window_bounds = array<i64: 128, 128>}, {pipeline_mode = #tpu.pipeline_mode<synchronous>, transform_indices = @transform_4, window_bounds = array<i64: 1, 128>}, {pipeline_mode = #tpu.pipeline_mode<synchronous>, transform_indices = @transform_5, window_bounds = array<i64: 128, 128>}, {pipeline_mode = #tpu.pipeline_mode<synchronous>, transform_indices = @transform_6, window_bounds = array<i64: 1, 128>}, {transform_indices = @transform_7, window_bounds = array<i64: 64, 128>}]} {
    %c0 = arith.constant 0 : index
    %c0_0 = arith.constant 0 : index
    %0 = vector.load %arg1[%c0, %c0_0] : memref<64x32xf32, #tpu.memory_space<vmem>>, vector<64x32xf32>
    %c0_1 = arith.constant 0 : index
    %c0_2 = arith.constant 0 : index
    %1 = vector.load %arg2[%c0_1, %c0_2] : memref<32x128xf32, #tpu.memory_space<vmem>>, vector<32x128xf32>
    %cst = arith.constant dense<0.000000e+00> : vector<64x128xf32>
    %2 = tpu.matmul %0, %1, %cst {dimension_numbers = #tpu.dot_dimension_numbers<[1], [0], [0], [1], [0, 0, 1, 1], [], []>} : vector<64x32xf32>, vector<32x128xf32>, vector<64x128xf32> -> vector<64x128xf32>
    %c0_3 = arith.constant 0 : index
    %c0_4 = arith.constant 0 : index
    %3 = vector.load %arg3[%c0_3, %c0_4] : memref<1x128xf32, #tpu.memory_space<vmem>>, vector<1x128xf32>
    %4 = vector.broadcast %3 : vector<1x128xf32> to vector<64x128xf32>
    %5 = arith.addf %2, %4 : vector<64x128xf32>
    %cst_5 = arith.constant 0.000000e+00 : f32
    %6 = vector.broadcast %cst_5 : f32 to vector<64x128xf32>
    %7 = arith.maximumf %5, %6 : vector<64x128xf32>
    %c0_6 = arith.constant 0 : index
    %c0_7 = arith.constant 0 : index
    %8 = vector.load %arg4[%c0_6, %c0_7] : memref<128x128xf32, #tpu.memory_space<vmem>>, vector<128x128xf32>
    %cst_8 = arith.constant dense<0.000000e+00> : vector<64x128xf32>
    %9 = tpu.matmul %7, %8, %cst_8 {dimension_numbers = #tpu.dot_dimension_numbers<[1], [0], [0], [1], [0, 0, 1, 1], [], []>} : vector<64x128xf32>, vector<128x128xf32>, vector<64x128xf32> -> vector<64x128xf32>
    %c0_9 = arith.constant 0 : index
    %c0_10 = arith.constant 0 : index
    %10 = vector.load %arg5[%c0_9, %c0_10] : memref<1x128xf32, #tpu.memory_space<vmem>>, vector<1x128xf32>
    %11 = vector.broadcast %10 : vector<1x128xf32> to vector<64x128xf32>
    %12 = arith.addf %9, %11 : vector<64x128xf32>
    %cst_11 = arith.constant 0.000000e+00 : f32
    %13 = vector.broadcast %cst_11 : f32 to vector<64x128xf32>
    %14 = arith.maximumf %12, %13 : vector<64x128xf32>
    %c0_12 = arith.constant 0 : index
    %c0_13 = arith.constant 0 : index
    %15 = vector.load %arg6[%c0_12, %c0_13] : memref<128x128xf32, #tpu.memory_space<vmem>>, vector<128x128xf32>
    %cst_14 = arith.constant dense<0.000000e+00> : vector<64x128xf32>
    %16 = tpu.matmul %14, %15, %cst_14 {dimension_numbers = #tpu.dot_dimension_numbers<[1], [0], [0], [1], [0, 0, 1, 1], [], []>} : vector<64x128xf32>, vector<128x128xf32>, vector<64x128xf32> -> vector<64x128xf32>
    %c0_15 = arith.constant 0 : index
    %c0_16 = arith.constant 0 : index
    %17 = vector.load %arg7[%c0_15, %c0_16] : memref<1x128xf32, #tpu.memory_space<vmem>>, vector<1x128xf32>
    %18 = vector.broadcast %17 : vector<1x128xf32> to vector<64x128xf32>
    %19 = arith.addf %16, %18 : vector<64x128xf32>
    %cst_17 = arith.constant 0.000000e+00 : f32
    %20 = vector.broadcast %cst_17 : f32 to vector<64x128xf32>
    %21 = arith.maximumf %19, %20 : vector<64x128xf32>
    %c0_18 = arith.constant 0 : index
    %c0_19 = arith.constant 0 : index
    %22 = vector.load %arg8[%c0_18, %c0_19] : memref<64x128xf32, #tpu.memory_space<vmem>>, vector<64x128xf32>
    tpu.vector_store %arg8[%c0_18, %c0_19], %21 {strides = array<i32>} : memref<64x128xf32, #tpu.memory_space<vmem>>, vector<64x128xf32>,
    return
  }
  func.func @transform_0(%arg0: i32) -> (i32, i32) {
    %c0_i32 = arith.constant 0 : i32
    %c0_i32_0 = arith.constant 0 : i32
    return %arg0, %c0_i32 : i32, i32
  }
  func.func @transform_1(%arg0: i32) -> (i32, i32) {
    %c0_i32 = arith.constant 0 : i32
    %c0_i32_0 = arith.constant 0 : i32
    %c0_i32_1 = arith.constant 0 : i32
    return %c0_i32, %c0_i32_0 : i32, i32
  }
  func.func @transform_2(%arg0: i32) -> (i32, i32) {
    %c0_i32 = arith.constant 0 : i32
    %c0_i32_0 = arith.constant 0 : i32
    %c0_i32_1 = arith.constant 0 : i32
    return %c0_i32, %c0_i32_0 : i32, i32
  }
  func.func @transform_3(%arg0: i32) -> (i32, i32) {
    %c0_i32 = arith.constant 0 : i32
    %c0_i32_0 = arith.constant 0 : i32
    %c0_i32_1 = arith.constant 0 : i32
    return %c0_i32, %c0_i32_0 : i32, i32
  }
  func.func @transform_4(%arg0: i32) -> (i32, i32) {
    %c0_i32 = arith.constant 0 : i32
    %c0_i32_0 = arith.constant 0 : i32
    %c0_i32_1 = arith.constant 0 : i32
    return %c0_i32, %c0_i32_0 : i32, i32
  }
  func.func @transform_5(%arg0: i32) -> (i32, i32) {
    %c0_i32 = arith.constant 0 : i32
    %c0_i32_0 = arith.constant 0 : i32
    %c0_i32_1 = arith.constant 0 : i32
    return %c0_i32, %c0_i32_0 : i32, i32
  }
  func.func @transform_6(%arg0: i32) -> (i32, i32) {
    %c0_i32 = arith.constant 0 : i32
    %c0_i32_0 = arith.constant 0 : i32
    %c0_i32_1 = arith.constant 0 : i32
    return %c0_i32, %c0_i32_0 : i32, i32
  }
  func.func @transform_7(%arg0: i32) -> (i32, i32) {
    %c0_i32 = arith.constant 0 : i32
    %c0_i32_0 = arith.constant 0 : i32
    return %arg0, %c0_i32 : i32, i32
  }
}

</mosaic_0001>

<llo_original>
// kernel: tpu_custom_call.1
$region0: #{tpu_custom_call.1}
  #allocation0 [shape = 'u32[]', space=smem, size = 0x4, offset = 0x4, fixed_abs, tag = 'smem constant byte address 0x4 - core index']
  #allocation1 [shape = 'u32[144,128]{1,0:T(1,128)}', space=vmem, size = 0x12000, scoped, tag = 'internal scratch']
  %s0 = inlined_call_operand.vmem [shape: f32[64,32], index: 0, kind: input, shape index: {}]
  %s1 = inlined_call_operand.vmem [shape: f32[32,128], index: 1, kind: input, shape index: {}]
  %s2 = inlined_call_operand.vmem [shape: f32[1,128], index: 2, kind: input, shape index: {}]
  %s3 = inlined_call_operand.hbm [shape: f32[128,128], index: 3, kind: input, shape index: {}]
  %s4 = inlined_call_operand.vmem [shape: f32[1,128], index: 4, kind: input, shape index: {}]
  %s5 = inlined_call_operand.hbm [shape: f32[128,128], index: 5, kind: input, shape index: {}]
  %s6 = inlined_call_operand.vmem [shape: f32[1,128], index: 6, kind: input, shape index: {}]
  %s7 = inlined_call_operand.hbm [shape: f32[64,128], index: 7, kind: output, shape index: {}]
  %s8 = sld [smem:[#allocation0]]
  $region46: #{tpu_custom_call.1} parent=0
    _
  %s10 = ssub.s32 1, %s8
  %s11 = scalar_select 0, %s10, %s8
  $region1: #{tpu_custom_call.1} parent=0
    #allocation2 [shape = 'u8[65536]{0}', space=vmem, size = 0x10000, scoped, tag = 'input window, operand 3, single buffered']
    #allocation3 [shape = 's32[1]{0}', space=sflag, size = 0x4, scoped, tag = 'scoped memory for tpu_custom_call.1']
    #allocation4 [shape = 's32[1]{0}', space=sflag, size = 0x4, scoped, tag = 'scoped memory for tpu_custom_call.1']
    #allocation5 [shape = 'u8[65536]{0}', space=vmem, size = 0x10000, scoped, tag = 'input window, operand 5, single buffered']
    #allocation6 [shape = 's32[1]{0}', space=sflag, size = 0x4, scoped, tag = 'scoped memory for tpu_custom_call.1']
    #allocation7 [shape = 'u8[32768]{0}', space=vmem, size = 0x8000, scoped, tag = 'output window, operand 0, single buffered']
    %12 = vsyncpa [#allocation3], 0
    %13 = vsyncpa [#allocation6], 0
    %14 = vsyncpa [#allocation4], 0
    // Predicated region
    $region2: #{tpu_custom_call.1} parent=1 // pred_check
      _
    $region3: #{tpu_custom_call.1} parent=1 // pred_check_branch
      %16 = sbr.rel (0) target = $region5
    $region4: #{tpu_custom_call.1} parent=1 // pred_region
      _
    $region5: #{tpu_custom_call.1} parent=1 // pred_fallthru
      _
    // Predicated region
    $region6: #{tpu_custom_call.1} parent=1 // pred_check
      _
    $region7: #{tpu_custom_call.1} parent=1 // pred_check_branch
      %18 = sbr.rel (0) target = $region9
    $region8: #{tpu_custom_call.1} parent=1 // pred_region
      _
    $region9: #{tpu_custom_call.1} parent=1 // pred_fallthru
      _
    // Predicated region
    $region10: #{tpu_custom_call.1} parent=1 // pred_check
      _
    $region11: #{tpu_custom_call.1} parent=1 // pred_check_branch
      %20 = sbr.rel (0) target = $region13
    $region12: #{tpu_custom_call.1} parent=1 // pred_region
      _
    $region13: #{tpu_custom_call.1} parent=1 // pred_fallthru
      _
    // Predicated region
    $region14: #{tpu_custom_call.1} parent=1 // pred_check
      _
    $region15: #{tpu_custom_call.1} parent=1 // pred_check_branch
      %22 = sbr.rel (0) target = $region17
    $region16: #{tpu_custom_call.1} parent=1 // pred_region
      %s24 = ssub.s32 2048, 2048
      %25 = vsyncadd [#allocation3], %s24
      %s26 = sshll.u32 [#allocation2], 4
      %s27 = int_to_ptr.vmem [resolvable:$true] %s26
      %32 = dma.hbm_to_vmem [thread:$0]  %s3, 2048, %s27, [#allocation3], 128, 128, 8
    $region17: #{tpu_custom_call.1} parent=1 // pred_fallthru
      _
    // Predicated region
    $region18: #{tpu_custom_call.1} parent=1 // pred_check
      _
    $region19: #{tpu_custom_call.1} parent=1 // pred_check_branch
      %34 = sbr.rel (0) target = $region21
    $region20: #{tpu_custom_call.1} parent=1 // pred_region
      _
    $region21: #{tpu_custom_call.1} parent=1 // pred_fallthru
      _
    // Predicated region
    $region22: #{tpu_custom_call.1} parent=1 // pred_check
      _
    $region23: #{tpu_custom_call.1} parent=1 // pred_check_branch
      %36 = sbr.rel (0) target = $region25
    $region24: #{tpu_custom_call.1} parent=1 // pred_region
      %s38 = ssub.s32 2048, 2048
      %39 = vsyncadd [#allocation6], %s38
      %s40 = sshll.u32 [#allocation5], 4
      %s41 = int_to_ptr.vmem [resolvable:$true] %s40
      %46 = dma.hbm_to_vmem [thread:$0]  %s5, 2048, %s41, [#allocation6], 128, 128, 8
    $region25: #{tpu_custom_call.1} parent=1 // pred_fallthru
      _
    // Predicated region
    $region26: #{tpu_custom_call.1} parent=1 // pred_check
      _
    $region27: #{tpu_custom_call.1} parent=1 // pred_check_branch
      %48 = sbr.rel (0) target = $region29
    $region28: #{tpu_custom_call.1} parent=1 // pred_region
      _
    $region29: #{tpu_custom_call.1} parent=1 // pred_fallthru
      _
    // Predicated region
    $region30: #{tpu_custom_call.1} parent=1 // pred_check
      _
    $region31: #{tpu_custom_call.1} parent=1 // pred_check_branch
      %50 = sbr.rel (0) target = $region33
    $region32: #{tpu_custom_call.1} parent=1 // pred_region
      %51 = dma.done [#allocation3], 2048
    $region33: #{tpu_custom_call.1} parent=1 // pred_fallthru
      _
    // Predicated region
    $region34: #{tpu_custom_call.1} parent=1 // pred_check
      _
    $region35: #{tpu_custom_call.1} parent=1 // pred_check_branch
      %53 = sbr.rel (0) target = $region37
    $region36: #{tpu_custom_call.1} parent=1 // pred_region
      %54 = dma.done [#allocation6], 2048
    $region37: #{tpu_custom_call.1} parent=1 // pred_fallthru
      _
    %v55 = vld [vmem:[%s0] sm:$0xff]
    %v56 = vld [vmem:[%s0 + $0x8] sm:$0xff]
    %v57 = vld [vmem:[%s0 + $0x10] sm:$0xff]
    %v58 = vld [vmem:[%s0 + $0x18] sm:$0xff]
    %v59 = vld [vmem:[%s0 + $0x20] sm:$0xff]
    %v60 = vld [vmem:[%s0 + $0x28] sm:$0xff]
    %v61 = vld [vmem:[%s0 + $0x30] sm:$0xff]
    %v62 = vld [vmem:[%s0 + $0x38] sm:$0xff]
    %v63 = vld [vmem:[%s1] sm:$0xff]
    %v64 = vld [vmem:[%s1 + $0x8] sm:$0xff]
    %v65 = vld [vmem:[%s1 + $0x10] sm:$0xff]
    %v66 = vld [vmem:[%s1 + $0x18] sm:$0xff]
    %v67 = vld [vmem:[%s2] sm:$0x1]
    %v69 = vlaneseq
    %v70 = vshrl.u32 %v69, 7
    %v71 = vsub.s32 0, %v70
    %v72 = vrot.slane %v67, %v71
    %vm74 = vcmask 261120
    %v76 = vsel %vm74, %v55, 0
    %v79 = vsel %vm74, %v56, 0
    %v82 = vsel %vm74, %v57, 0
    %v85 = vsel %vm74, %v58, 0
    %v88 = vsel %vm74, %v59, 0
    %v91 = vsel %vm74, %v60, 0
    %v94 = vsel %vm74, %v61, 0
    %v97 = vsel %vm74, %v62, 0
    %99 = vmatprep.subr.mxu0 0.0
    %100 = vmatpush1.msra.mxu0 0.0
    %101 = vmatprep.subr.mxu0 0.0
    %102 = vmatpush1.msra.mxu0 0.0
    %103 = vmatprep.subr.mxu0 0.0
    %104 = vmatpush1.msra.mxu0 0.0
    %105 = vmatprep.subr.mxu0 0.0
    %106 = vmatpush1.msra.mxu0 0.0
    %107 = vmatprep.subr.mxu0 0.0
    %108 = vmatpush1.msra.mxu0 0.0
    %109 = vmatprep.subr.mxu0 0.0
    %110 = vmatpush1.msra.mxu0 0.0
    %111 = vmatprep.subr.mxu0 0.0
    %112 = vmatpush1.msra.mxu0 0.0
    %113 = vmatprep.subr.mxu0 0.0
    %114 = vmatpush1.msra.mxu0 0.0
    %115 = vmatprep.subr.mxu0 0.0
    %116 = vmatpush1.msra.mxu0 0.0
    %117 = vmatprep.subr.mxu0 0.0
    %118 = vmatpush1.msra.mxu0 0.0
    %119 = vmatprep.subr.mxu0 0.0
    %120 = vmatpush1.msra.mxu0 0.0
    %121 = vmatprep.subr.mxu0 0.0
    %122 = vmatpush1.msra.mxu0 0.0
    %123 = vmatprep.subr.mxu0 0.0
    %124 = vmatpush1.msra.mxu0 %v66
    %125 = vmatprep.subr.mxu0 0.0
    %126 = vmatpush1.msra.mxu0 %v65
    %127 = vmatprep.subr.mxu0 0.0
    %128 = vmatpush1.msra.mxu0 %v64
    %129 = vmatprep.subr.mxu0 0.0
    %130 = vmatpush1.msra.mxu0 %v63
    %131 = vmatprep.subr.mxu0 0.0
    %132 = vmatpush2.msra.mxu0 0.0
    %133 = vmatprep.subr.mxu0 0.0
    %134 = vmatpush2.msra.mxu0 0.0
    %135 = vmatprep.subr.mxu0 0.0
    %136 = vmatpush2.msra.mxu0 0.0
    %137 = vmatprep.subr.mxu0 0.0
    %138 = vmatpush2.msra.mxu0 0.0
    %139 = vmatprep.subr.mxu0 0.0
    %140 = vmatpush2.msra.mxu0 0.0
    %141 = vmatprep.subr.mxu0 0.0
    %142 = vmatpush2.msra.mxu0 0.0
    %143 = vmatprep.subr.mxu0 0.0
    %144 = vmatpush2.msra.mxu0 0.0
    %145 = vmatprep.subr.mxu0 0.0
    %146 = vmatpush2.msra.mxu0 0.0
    %147 = vmatprep.subr.mxu0 0.0
    %148 = vmatpush2.msra.mxu0 0.0
    %149 = vmatprep.subr.mxu0 0.0
    %150 = vmatpush2.msra.mxu0 0.0
    %151 = vmatprep.subr.mxu0 0.0
    %152 = vmatpush2.msra.mxu0 0.0
    %153 = vmatprep.subr.mxu0 0.0
    %154 = vmatpush2.msra.mxu0 0.0
    %155 = vmatprep.subr.mxu0 0.0
    %156 = vmatpush2.msra.mxu0 0.0
    %157 = vmatprep.subr.mxu0 0.0
    %158 = vmatpush2.msra.mxu0 0.0
    %159 = vmatprep.subr.mxu0 0.0
    %160 = vmatpush2.msra.mxu0 0.0
    %161 = vmatprep.subr.mxu0 0.0
    %162 = vmatpush2.msra.mxu0 0.0
    %163 = vmatprep.mubr.f32.mxu0 0.0
    %164 = vmatmul.mubr.f32.gmra.mxu0 %v76
    %v165 = vpop.f32.mrf.mxu0
    %v166 = vadd.f32 %v72, %v165
    %v167 = vpop.f32.mrf.mxu0
    %168 = vmatprep.mubr.f32.mxu0 0.0
    %169 = vmatmul.mubr.f32.gmra.mxu0 %v79
    %v170 = vpop.f32.mrf.mxu0
    %v171 = vadd.f32 %v72, %v170
    %v172 = vpop.f32.mrf.mxu0
    %173 = vmatprep.mubr.f32.mxu0 0.0
    %174 = vmatmul.mubr.f32.gmra.mxu0 %v82
    %v175 = vpop.f32.mrf.mxu0
    %v176 = vadd.f32 %v72, %v175
    %v177 = vpop.f32.mrf.mxu0
    %178 = vmatprep.mubr.f32.mxu0 0.0
    %179 = vmatmul.mubr.f32.gmra.mxu0 %v85
    %v180 = vpop.f32.mrf.mxu0
    %v181 = vadd.f32 %v72, %v180
    %v182 = vpop.f32.mrf.mxu0
    %183 = vmatprep.mubr.f32.mxu0 0.0
    %184 = vmatmul.mubr.f32.gmra.mxu0 %v88
    %v185 = vpop.f32.mrf.mxu0
    %v186 = vadd.f32 %v72, %v185
    %v187 = vpop.f32.mrf.mxu0
    %188 = vmatprep.mubr.f32.mxu0 0.0
    %189 = vmatmul.mubr.f32.gmra.mxu0 %v91
    %v190 = vpop.f32.mrf.mxu0
    %v191 = vadd.f32 %v72, %v190
    %v192 = vpop.f32.mrf.mxu0
    %193 = vmatprep.mubr.f32.mxu0 0.0
    %194 = vmatmul.mubr.f32.gmra.mxu0 %v94
    %v195 = vpop.f32.mrf.mxu0
    %v196 = vadd.f32 %v72, %v195
    %v197 = vpop.f32.mrf.mxu0
    %198 = vmatprep.mubr.f32.mxu0 0.0
    %199 = vmatmul.mubr.f32.gmra.mxu0 %v97
    %v200 = vpop.f32.mrf.mxu0
    %v201 = vadd.f32 %v72, %v200
    %v202 = vpop.f32.mrf.mxu0
    %203 = vdwg.mxu0
    %v204 = vmax.f32 %v166, 0.0
    %v205 = vmax.f32 %v171, 0.0
    %v206 = vmax.f32 %v176, 0.0
    %v207 = vmax.f32 %v181, 0.0
    %v208 = vmax.f32 %v186, 0.0
    %v209 = vmax.f32 %v191, 0.0
    %v210 = vmax.f32 %v196, 0.0
    %v211 = vmax.f32 %v201, 0.0
    %v212 = vld [vmem:[#allocation2] sm:$0xff]
    %v213 = vld [vmem:[#allocation2 + $0x8] sm:$0xff]
    %v214 = vld [vmem:[#allocation2 + $0x10] sm:$0xff]
    %v215 = vld [vmem:[#allocation2 + $0x18] sm:$0xff]
    %v216 = vld [vmem:[#allocation2 + $0x20] sm:$0xff]
    %v217 = vld [vmem:[#allocation2 + $0x28] sm:$0xff]
    %v218 = vld [vmem:[#allocation2 + $0x30] sm:$0xff]
    %v219 = vld [vmem:[#allocation2 + $0x38] sm:$0xff]
    %v220 = vld [vmem:[#allocation2 + $0x40] sm:$0xff]
    %v221 = vld [vmem:[#allocation2 + $0x48] sm:$0xff]
    %v222 = vld [vmem:[#allocation2 + $0x50] sm:$0xff]
    %v223 = vld [vmem:[#allocation2 + $0x58] sm:$0xff]
    %v224 = vld [vmem:[#allocation2 + $0x60] sm:$0xff]
    %v225 = vld [vmem:[#allocation2 + $0x68] sm:$0xff]
    %v226 = vld [vmem:[#allocation2 + $0x70] sm:$0xff]
    %v227 = vld [vmem:[#allocation2 + $0x78] sm:$0xff]
    %v228 = vld [vmem:[%s4] sm:$0x1]
    %v230 = vlaneseq
    %v231 = vshrl.u32 %v230, 7
    %v232 = vsub.s32 0, %v231
    %v233 = vrot.slane %v228, %v232
    %235 = vmatprep.subr.mxu0 0.0
    %236 = vmatpush1.msra.mxu0 %v227
    %237 = vmatprep.subr.mxu0 0.0
    %238 = vmatpush1.msra.mxu0 %v226
    %239 = vmatprep.subr.mxu0 0.0
    %240 = vmatpush1.msra.mxu0 %v225
    %241 = vmatprep.subr.mxu0 0.0
    %242 = vmatpush1.msra.mxu0 %v224
    %243 = vmatprep.subr.mxu0 0.0
    %244 = vmatpush1.msra.mxu0 %v223
    %245 = vmatprep.subr.mxu0 0.0
    %246 = vmatpush1.msra.mxu0 %v222
    %247 = vmatprep.subr.mxu0 0.0
    %248 = vmatpush1.msra.mxu0 %v221
    %249 = vmatprep.subr.mxu0 0.0
    %250 = vmatpush1.msra.mxu0 %v220
    %251 = vmatprep.subr.mxu0 0.0
    %252 = vmatpush1.msra.mxu0 %v219
    %253 = vmatprep.subr.mxu0 0.0
    %254 = vmatpush1.msra.mxu0 %v218
    %255 = vmatprep.subr.mxu0 0.0
    %256 = vmatpush1.msra.mxu0 %v217
    %257 = vmatprep.subr.mxu0 0.0
    %258 = vmatpush1.msra.mxu0 %v216
    %259 = vmatprep.subr.mxu0 0.0
    %260 = vmatpush1.msra.mxu0 %v215
    %261 = vmatprep.subr.mxu0 0.0
    %262 = vmatpush1.msra.mxu0 %v214
    %263 = vmatprep.subr.mxu0 0.0
    %264 = vmatpush1.msra.mxu0 %v213
    %265 = vmatprep.subr.mxu0 0.0
    %266 = vmatpush1.msra.mxu0 %v212
    %267 = vmatprep.subr.mxu0 0.0
    %268 = vmatpush2.msra.mxu0 0.0
    %269 = vmatprep.subr.mxu0 0.0
    %270 = vmatpush2.msra.mxu0 0.0
    %271 = vmatprep.subr.mxu0 0.0
    %272 = vmatpush2.msra.mxu0 0.0
    %273 = vmatprep.subr.mxu0 0.0
    %274 = vmatpush2.msra.mxu0 0.0
    %275 = vmatprep.subr.mxu0 0.0
    %276 = vmatpush2.msra.mxu0 0.0
    %277 = vmatprep.subr.mxu0 0.0
    %278 = vmatpush2.msra.mxu0 0.0
    %279 = vmatprep.subr.mxu0 0.0
    %280 = vmatpush2.msra.mxu0 0.0
    %281 = vmatprep.subr.mxu0 0.0
    %282 = vmatpush2.msra.mxu0 0.0
    %283 = vmatprep.subr.mxu0 0.0
    %284 = vmatpush2.msra.mxu0 0.0
    %285 = vmatprep.subr.mxu0 0.0
    %286 = vmatpush2.msra.mxu0 0.0
    %287 = vmatprep.subr.mxu0 0.0
    %288 = vmatpush2.msra.mxu0 0.0
    %289 = vmatprep.subr.mxu0 0.0
    %290 = vmatpush2.msra.mxu0 0.0
    %291 = vmatprep.subr.mxu0 0.0
    %292 = vmatpush2.msra.mxu0 0.0
    %293 = vmatprep.subr.mxu0 0.0
    %294 = vmatpush2.msra.mxu0 0.0
    %295 = vmatprep.subr.mxu0 0.0
    %296 = vmatpush2.msra.mxu0 0.0
    %297 = vmatprep.subr.mxu0 0.0
    %298 = vmatpush2.msra.mxu0 0.0
    %299 = vmatprep.mubr.f32.mxu0 0.0
    %300 = vmatmul.mubr.f32.gmra.mxu0 %v204
    %v301 = vpop.f32.mrf.mxu0
    %v302 = vadd.f32 %v233, %v301
    %v303 = vpop.f32.mrf.mxu0
    %304 = vmatprep.mubr.f32.mxu0 0.0
    %305 = vmatmul.mubr.f32.gmra.mxu0 %v205
    %v306 = vpop.f32.mrf.mxu0
    %v307 = vadd.f32 %v233, %v306
    %v308 = vpop.f32.mrf.mxu0
    %309 = vmatprep.mubr.f32.mxu0 0.0
    %310 = vmatmul.mubr.f32.gmra.mxu0 %v206
    %v311 = vpop.f32.mrf.mxu0
    %v312 = vadd.f32 %v233, %v311
    %v313 = vpop.f32.mrf.mxu0
    %314 = vmatprep.mubr.f32.mxu0 0.0
    %315 = vmatmul.mubr.f32.gmra.mxu0 %v207
    %v316 = vpop.f32.mrf.mxu0
    %v317 = vadd.f32 %v233, %v316
    %v318 = vpop.f32.mrf.mxu0
    %319 = vmatprep.mubr.f32.mxu0 0.0
    %320 = vmatmul.mubr.f32.gmra.mxu0 %v208
    %v321 = vpop.f32.mrf.mxu0
    %v322 = vadd.f32 %v233, %v321
    %v323 = vpop.f32.mrf.mxu0
    %324 = vmatprep.mubr.f32.mxu0 0.0
    %325 = vmatmul.mubr.f32.gmra.mxu0 %v209
    %v326 = vpop.f32.mrf.mxu0
    %v327 = vadd.f32 %v233, %v326
    %v328 = vpop.f32.mrf.mxu0
    %329 = vmatprep.mubr.f32.mxu0 0.0
    %330 = vmatmul.mubr.f32.gmra.mxu0 %v210
    %v331 = vpop.f32.mrf.mxu0
    %v332 = vadd.f32 %v233, %v331
    %v333 = vpop.f32.mrf.mxu0
    %334 = vmatprep.mubr.f32.mxu0 0.0
    %335 = vmatmul.mubr.f32.gmra.mxu0 %v211
    %v336 = vpop.f32.mrf.mxu0
    %v337 = vadd.f32 %v233, %v336
    %v338 = vpop.f32.mrf.mxu0
    %339 = vdwg.mxu0
    %v340 = vmax.f32 %v302, 0.0
    %v341 = vmax.f32 %v307, 0.0
    %v342 = vmax.f32 %v312, 0.0
    %v343 = vmax.f32 %v317, 0.0
    %v344 = vmax.f32 %v322, 0.0
    %v345 = vmax.f32 %v327, 0.0
    %v346 = vmax.f32 %v332, 0.0
    %v347 = vmax.f32 %v337, 0.0
    %v348 = vld [vmem:[#allocation5] sm:$0xff]
    %v349 = vld [vmem:[#allocation5 + $0x8] sm:$0xff]
    %v350 = vld [vmem:[#allocation5 + $0x10] sm:$0xff]
    %v351 = vld [vmem:[#allocation5 + $0x18] sm:$0xff]
    %v352 = vld [vmem:[#allocation5 + $0x20] sm:$0xff]
    %v353 = vld [vmem:[#allocation5 + $0x28] sm:$0xff]
    %v354 = vld [vmem:[#allocation5 + $0x30] sm:$0xff]
    %v355 = vld [vmem:[#allocation5 + $0x38] sm:$0xff]
    %v356 = vld [vmem:[#allocation5 + $0x40] sm:$0xff]
    %v357 = vld [vmem:[#allocation5 + $0x48] sm:$0xff]
    %v358 = vld [vmem:[#allocation5 + $0x50] sm:$0xff]
    %v359 = vld [vmem:[#allocation5 + $0x58] sm:$0xff]
    %v360 = vld [vmem:[#allocation5 + $0x60] sm:$0xff]
    %v361 = vld [vmem:[#allocation5 + $0x68] sm:$0xff]
    %v362 = vld [vmem:[#allocation5 + $0x70] sm:$0xff]
    %v363 = vld [vmem:[#allocation5 + $0x78] sm:$0xff]
    %v364 = vld [vmem:[%s6] sm:$0x1]
    %v366 = vlaneseq
    %v367 = vshrl.u32 %v366, 7
    %v368 = vsub.s32 0, %v367
    %v369 = vrot.slane %v364, %v368
    %371 = vmatprep.subr.mxu0 0.0
    %372 = vmatpush1.msra.mxu0 %v363
    %373 = vmatprep.subr.mxu0 0.0
    %374 = vmatpush1.msra.mxu0 %v362
    %375 = vmatprep.subr.mxu0 0.0
    %376 = vmatpush1.msra.mxu0 %v361
    %377 = vmatprep.subr.mxu0 0.0
    %378 = vmatpush1.msra.mxu0 %v360
    %379 = vmatprep.subr.mxu0 0.0
    %380 = vmatpush1.msra.mxu0 %v359
    %381 = vmatprep.subr.mxu0 0.0
    %382 = vmatpush1.msra.mxu0 %v358
    %383 = vmatprep.subr.mxu0 0.0
    %384 = vmatpush1.msra.mxu0 %v357
    %385 = vmatprep.subr.mxu0 0.0
    %386 = vmatpush1.msra.mxu0 %v356
    %387 = vmatprep.subr.mxu0 0.0
    %388 = vmatpush1.msra.mxu0 %v355
    %389 = vmatprep.subr.mxu0 0.0
    %390 = vmatpush1.msra.mxu0 %v354
    %391 = vmatprep.subr.mxu0 0.0
    %392 = vmatpush1.msra.mxu0 %v353
    %393 = vmatprep.subr.mxu0 0.0
    %394 = vmatpush1.msra.mxu0 %v352
    %395 = vmatprep.subr.mxu0 0.0
    %396 = vmatpush1.msra.mxu0 %v351
    %397 = vmatprep.subr.mxu0 0.0
    %398 = vmatpush1.msra.mxu0 %v350
    %399 = vmatprep.subr.mxu0 0.0
    %400 = vmatpush1.msra.mxu0 %v349
    %401 = vmatprep.subr.mxu0 0.0
    %402 = vmatpush1.msra.mxu0 %v348
    %403 = vmatprep.subr.mxu0 0.0
    %404 = vmatpush2.msra.mxu0 0.0
    %405 = vmatprep.subr.mxu0 0.0
    %406 = vmatpush2.msra.mxu0 0.0
    %407 = vmatprep.subr.mxu0 0.0
    %408 = vmatpush2.msra.mxu0 0.0
    %409 = vmatprep.subr.mxu0 0.0
    %410 = vmatpush2.msra.mxu0 0.0
    %411 = vmatprep.subr.mxu0 0.0
    %412 = vmatpush2.msra.mxu0 0.0
    %413 = vmatprep.subr.mxu0 0.0
    %414 = vmatpush2.msra.mxu0 0.0
    %415 = vmatprep.subr.mxu0 0.0
    %416 = vmatpush2.msra.mxu0 0.0
    %417 = vmatprep.subr.mxu0 0.0
    %418 = vmatpush2.msra.mxu0 0.0
    %419 = vmatprep.subr.mxu0 0.0
    %420 = vmatpush2.msra.mxu0 0.0
    %421 = vmatprep.subr.mxu0 0.0
    %422 = vmatpush2.msra.mxu0 0.0
    %423 = vmatprep.subr.mxu0 0.0
    %424 = vmatpush2.msra.mxu0 0.0
    %425 = vmatprep.subr.mxu0 0.0
    %426 = vmatpush2.msra.mxu0 0.0
    %427 = vmatprep.subr.mxu0 0.0
    %428 = vmatpush2.msra.mxu0 0.0
    %429 = vmatprep.subr.mxu0 0.0
    %430 = vmatpush2.msra.mxu0 0.0
    %431 = vmatprep.subr.mxu0 0.0
    %432 = vmatpush2.msra.mxu0 0.0
    %433 = vmatprep.subr.mxu0 0.0
    %434 = vmatpush2.msra.mxu0 0.0
    %435 = vmatprep.mubr.f32.mxu0 0.0
    %436 = vmatmul.mubr.f32.gmra.mxu0 %v340
    %v437 = vpop.f32.mrf.mxu0
    %v438 = vadd.f32 %v369, %v437
    %v439 = vpop.f32.mrf.mxu0
    %440 = vmatprep.mubr.f32.mxu0 0.0
    %441 = vmatmul.mubr.f32.gmra.mxu0 %v341
    %v442 = vpop.f32.mrf.mxu0
    %v443 = vadd.f32 %v369, %v442
    %v444 = vpop.f32.mrf.mxu0
    %445 = vmatprep.mubr.f32.mxu0 0.0
    %446 = vmatmul.mubr.f32.gmra.mxu0 %v342
    %v447 = vpop.f32.mrf.mxu0
    %v448 = vadd.f32 %v369, %v447
    %v449 = vpop.f32.mrf.mxu0
    %450 = vmatprep.mubr.f32.mxu0 0.0
    %451 = vmatmul.mubr.f32.gmra.mxu0 %v343
    %v452 = vpop.f32.mrf.mxu0
    %v453 = vadd.f32 %v369, %v452
    %v454 = vpop.f32.mrf.mxu0
    %455 = vmatprep.mubr.f32.mxu0 0.0
    %456 = vmatmul.mubr.f32.gmra.mxu0 %v344
    %v457 = vpop.f32.mrf.mxu0
    %v458 = vadd.f32 %v369, %v457
    %v459 = vpop.f32.mrf.mxu0
    %460 = vmatprep.mubr.f32.mxu0 0.0
    %461 = vmatmul.mubr.f32.gmra.mxu0 %v345
    %v462 = vpop.f32.mrf.mxu0
    %v463 = vadd.f32 %v369, %v462
    %v464 = vpop.f32.mrf.mxu0
    %465 = vmatprep.mubr.f32.mxu0 0.0
    %466 = vmatmul.mubr.f32.gmra.mxu0 %v346
    %v467 = vpop.f32.mrf.mxu0
    %v468 = vadd.f32 %v369, %v467
    %v469 = vpop.f32.mrf.mxu0
    %470 = vmatprep.mubr.f32.mxu0 0.0
    %471 = vmatmul.mubr.f32.gmra.mxu0 %v347
    %v472 = vpop.f32.mrf.mxu0
    %v473 = vadd.f32 %v369, %v472
    %v474 = vpop.f32.mrf.mxu0
    %475 = vdwg.mxu0
    %v476 = vmax.f32 %v438, 0.0
    %v477 = vmax.f32 %v443, 0.0
    %v478 = vmax.f32 %v448, 0.0
    %v479 = vmax.f32 %v453, 0.0
    %v480 = vmax.f32 %v458, 0.0
    %v481 = vmax.f32 %v463, 0.0
    %v482 = vmax.f32 %v468, 0.0
    %v483 = vmax.f32 %v473, 0.0
    %484 = vst [vmem:[#allocation7] sm:$0xff] %v476
    %485 = vst [vmem:[#allocation7 + $0x8] sm:$0xff] %v477
    %486 = vst [vmem:[#allocation7 + $0x10] sm:$0xff] %v478
    %487 = vst [vmem:[#allocation7 + $0x18] sm:$0xff] %v479
    %488 = vst [vmem:[#allocation7 + $0x20] sm:$0xff] %v480
    %489 = vst [vmem:[#allocation7 + $0x28] sm:$0xff] %v481
    %490 = vst [vmem:[#allocation7 + $0x30] sm:$0xff] %v482
    %491 = vst [vmem:[#allocation7 + $0x38] sm:$0xff] %v483
    // Predicated region
    $region38: #{tpu_custom_call.1} parent=1 // pred_check
      _
    $region39: #{tpu_custom_call.1} parent=1 // pred_check_branch
      %493 = sbr.rel (0) target = $region41
    $region40: #{tpu_custom_call.1} parent=1 // pred_region
      %s495 = ssub.s32 1024, 1024
      %496 = vsyncadd [#allocation4], %s495
      %s497 = sshll.u32 [#allocation7], 4
      %s498 = int_to_ptr.vmem [resolvable:$true] %s497
      %503 = dma.vmem_to_hbm [thread:$0]  %s498, 1024, %s7, [#allocation4], 128, 128, 8
    $region41: #{tpu_custom_call.1} parent=1 // pred_fallthru
      _
    // Predicated region
    $region42: #{tpu_custom_call.1} parent=1 // pred_check
      _
    $region43: #{tpu_custom_call.1} parent=1 // pred_check_branch
      %505 = sbr.rel (0) target = $region45
    $region44: #{tpu_custom_call.1} parent=1 // pred_region
      %506 = dma.done [#allocation4], 1024
    $region45: #{tpu_custom_call.1} parent=1 // pred_fallthru
      _
    %507 = vsyncpa [#allocation3], 1
    %508 = vsyncpa [#allocation6], 1
    %509 = vsyncpa [#allocation4], 1

</llo_original>
